<compile_context>
chip_gen: v5e
topology: v5e:2x2
jax: 0.10.0
libtpu: 0.0.40
codegen_flags: <defaults>
</compile_context>

<pallas_src>
import numpy as np
import jax
import jax.numpy as jnp
from jax.experimental import pallas as pl
from jax.experimental.pallas import tpu as pltpu

# Static problem configuration (word_dim = 3 -> conv padding int(3/2) = 1).
WORD_DIM = 3
C1, C2 = 16, 32
H = W = 16
H2, W2 = H // 2, W // 2           # after pool 1: (8, 8)
H3, W3 = H // 4, W // 4           # after pool 2: (4, 4)
OUT_CLASSES = 5
BN_EPS = 1e-5

LANE1 = 2 * W2 * C1               # 256 : conv1 out lanes  (b2*128 + v*16 + c)
LANE2 = 2 * W3 * C2               # 256 : conv2 out lanes  (b2*128 + v2*32 + d)
LANEP1 = W2 * C1                  # 128 : pooled1 lanes    (v*16 + c)
LANEP2 = W3 * C2                  # 128 : pooled2 lanes    (v2*32 + d)
LANEO = OUT_CLASSES * C2          # 160 : output lanes     (o*32 + d)
K1 = 4 * (W + 2)                  # 72  : conv1 GEMM K  (4 padded input rows)
K2 = 3 * LANEP1                   # 384 : conv2 GEMM K  (3 pooled1 rows)


def _action_cnn_kernel(x1_ref, w1_ref, w2_ref, w3_ref, aux_ref, out_ref):
  """One grid step == one block of B batch elements (straight-line, no loops).

  x1_ref : (8B, 72)   conv1 GEMM lhs; row (b,u) = padded input rows
                      [2u, 2u+1, 2u+2, 2u+3]; per-b row order u=[0,2,4,6,1,3,5,7]
  w1_ref : (72, 512)  conv1 banded weight; cols [0:256]=even act1 rows (a=0),
                      [256:512]=odd rows (a=1); lane = b2*128 + v*16 + c
  w2_ref : (384, 256) conv2 banded weight; rows = 3 kh taps x 128 pooled1 lanes
  w3_ref : (128, 160) folded Linear weight; out lane = o*32 + d
  aux_ref: (5, 512)   rows = [s1 | b1 | s2,pad | b2,pad | b3,pad] (BN pre-folded)
  out_ref: (4B, 160)  row (b, u2), lane = o*32 + d
  """
  bsz = x1_ref.shape[0] // 8
  s1 = aux_ref[0:1, :]
  b1 = aux_ref[1:2, :]
  s2 = aux_ref[2:3, 0:LANE2]
  b2 = aux_ref[3:4, 0:LANE2]
  b3 = aux_ref[4:5, 0:LANEO]

  # ---- Block 1: conv(1->16) + BN + ReLU, both output-row parities in ONE GEMM.
  a = jnp.dot(x1_ref[...], w1_ref[...], preferred_element_type=jnp.float32)
  a = jnp.maximum(a * s1 + b1, 0.0)                               # (8B, 512)

  # ---- MaxPool 2x2 #1: rows via the two 256-col halves (a = 0/1),
  #      columns via the two 128-lane halves (b2 = 0/1).
  a0, a1 = a[:, :LANE1], a[:, LANE1:]
  p = jnp.maximum(jnp.maximum(a0[:, :LANEP1], a0[:, LANEP1:]),
                  jnp.maximum(a1[:, :LANEP1], a1[:, LANEP1:]))    # (8B, 128)

  # pooled1 rows per b arrive already sorted [0,2,4,6 | 1,3,5,7] (host-side
  # permutation), so the row-parity split needed by conv2 is contiguous slices.
  p = p.reshape(bsz, 8, LANEP1)
  pe, po = p[:, 0:4, :], p[:, 4:8, :]
  zrow = jnp.zeros((bsz, 1, LANEP1), jnp.float32)
  pe_pad = jnp.concatenate([pe, zrow], axis=1)   # pooled1 rows {0,2,4,6,8(=0)}
  po_pad = jnp.concatenate([zrow, po], axis=1)   # pooled1 rows {-1(=0),1,3,5,7}

  # ---- Block 2: conv(16->32) + BN + ReLU, both output-row parities in ONE GEMM.
  # lhs row (b,u2) = [input row i2-1 | i2 | i2+1] (3 x 128 lanes), i2 = 2*u2+a2.
  l_a0 = jnp.concatenate([po_pad[:, 0:4], pe,            po_pad[:, 1:5]], axis=2)
  l_a1 = jnp.concatenate([pe,             po_pad[:, 1:5], pe_pad[:, 1:5]], axis=2)
  l2 = jnp.concatenate([l_a0, l_a1], axis=1).reshape(8 * bsz, K2)
  z = jnp.dot(l2, w2_ref[...], preferred_element_type=jnp.float32)  # (8B, 256)
  z = jnp.maximum(z * s2 + b2, 0.0)

  # ---- MaxPool 2x2 #2 (same trick) -> pooled2 (4B, 128), lane = v2*32 + d.
  z = z.reshape(bsz, 8, LANE2)
  z0, z1 = z[:, 0:4, :], z[:, 4:8, :]
  q = jnp.maximum(jnp.maximum(z0[:, :, :LANEP2], z0[:, :, LANEP2:]),
                  jnp.maximum(z1[:, :, :LANEP2], z1[:, :, LANEP2:]))
  q = q.reshape(4 * bsz, LANEP2)

  # ---- nn.Linear over the width axis (exactly as the PyTorch forward does).
  out_ref[...] = jnp.dot(q, w3_ref[...],
                         preferred_element_type=jnp.float32) + b3   # (4B, 160)


def _build_conv1_lhs(x):
  """x: (n, 1, H, W) -> conv1 GEMM lhs (n*8, 72) in the kernel's row order."""
  n = x.shape[0]
  xs = x[:, 0].astype(jnp.float32)
  xpad = jnp.pad(xs, ((0, 0), (1, 1), (1, 1)))            # (n, 18, 18)
  xpe, xpo = xpad[:, 0::2, :], xpad[:, 1::2, :]           # even/odd rows (n,9,18)
  lhs = jnp.concatenate([xpe[:, 0:8], xpo[:, 0:8],
                         xpe[:, 1:9], xpo[:, 1:9]], axis=-1)   # (n, 8, 72)
  uperm = jnp.asarray([0, 2, 4, 6, 1, 3, 5, 7], jnp.int32)     # evens then odds
  return lhs[:, uperm, :].reshape(n * 8, K1)


@jax.jit
def action_cnn_forward(x, packed):
  """x: (N, 1, 16, 16) f32. Returns (N, 32, 4, 5) == third(second(first(x)))."""
  w1cat, w2cat, w3big, aux = packed
  n = x.shape[0]
  bblk = min(16, n)                       # conv2 GEMM M = 8*bblk (=128 @ bblk=16)
  n_pad = -(-n // bblk) * bblk
  if n_pad != n:
    x = jnp.pad(x, ((0, n_pad - n), (0, 0), (0, 0), (0, 0)))
  x1 = _build_conv1_lhs(x)                # (n_pad*8, 72)

  out = pl.pallas_call(
      _action_cnn_kernel,
      out_shape=jax.ShapeDtypeStruct((n_pad * 4, LANEO), jnp.float32),
      grid=(n_pad // bblk,),
      in_specs=[
          pl.BlockSpec((8 * bblk, K1), lambda i: (i, 0)),
          pl.BlockSpec((K1, 2 * LANE1), lambda i: (0, 0)),
          pl.BlockSpec((K2, LANE2), lambda i: (0, 0)),
          pl.BlockSpec((LANEP2, LANEO), lambda i: (0, 0)),
          pl.BlockSpec((5, 2 * LANE1), lambda i: (0, 0)),
      ],
      out_specs=pl.BlockSpec((4 * bblk, LANEO), lambda i: (i, 0)),
      compiler_params=pltpu.CompilerParams(dimension_semantics=("parallel",)),
  )(x1, w1cat, w2cat, w3big, aux)

  out = out[: n * 4].reshape(n, H3, OUT_CLASSES, C2)
  return out.transpose(0, 3, 1, 2)        # NCHW-style (N, 32, H/4, out_classes)


def init_raw_params(key):
  ks = jax.random.split(key, 14)
  w1 = 0.30 * jax.random.normal(ks[0], (WORD_DIM, WORD_DIM, 1, C1), jnp.float32)
  b1 = 0.10 * jax.random.normal(ks[1], (C1,), jnp.float32)
  g1 = 1.0 + 0.10 * jax.random.normal(ks[2], (C1,), jnp.float32)
  be1 = 0.10 * jax.random.normal(ks[3], (C1,), jnp.float32)
  m1 = 0.10 * jax.random.normal(ks[4], (C1,), jnp.float32)
  v1 = 1.0 + 0.50 * jax.random.uniform(ks[5], (C1,), jnp.float32)
  w2 = 0.10 * jax.random.normal(ks[6], (WORD_DIM, WORD_DIM, C1, C2), jnp.float32)
  b2 = 0.10 * jax.random.normal(ks[7], (C2,), jnp.float32)
  g2 = 1.0 + 0.10 * jax.random.normal(ks[8], (C2,), jnp.float32)
  be2 = 0.10 * jax.random.normal(ks[9], (C2,), jnp.float32)
  m2 = 0.10 * jax.random.normal(ks[10], (C2,), jnp.float32)
  v2 = 1.0 + 0.50 * jax.random.uniform(ks[11], (C2,), jnp.float32)
  w3 = 0.20 * jax.random.normal(ks[12], (OUT_CLASSES, W3), jnp.float32)
  b3 = 0.10 * jax.random.normal(ks[13], (OUT_CLASSES,), jnp.float32)
  return (w1, b1, g1, be1, m1, v1, w2, b2, g2, be2, m2, v2, w3, b3)


def pack_params(raw):
  """Fold BN and pre-arrange all weights into the lane-dense banded operands."""
  # TODO(synk): train-mode BatchNorm batch statistics are not reproduced; the
  # running statistics are folded into a per-channel affine (eval-mode).
  (w1, b1, g1, be1, m1, v1, w2, b2, g2, be2, m2, v2, w3, b3) = (
      np.asarray(t, np.float32) for t in raw)
  s1 = g1 / np.sqrt(v1 + BN_EPS); sb1 = be1 + s1 * (b1 - m1)
  s2 = g2 / np.sqrt(v2 + BN_EPS); sb2 = be2 + s2 * (b2 - m2)
  w1 = w1[:, :, 0, :]                                   # (3, 3, C1)

  # conv1: per-kh banded matrix mapping one padded input row (18 cols) to the
  # 256-lane conv output row; output lane = b2*128 + v*16 + c for column j=2v+b2.
  w1big = np.zeros((3, W + 2, LANE1), np.float32)
  for kh in range(3):
    for v in range(W2):
      for bp in range(2):
        j = 2 * v + bp
        for kw in range(3):
          w1big[kh, j + kw, bp * 128 + v * C1: bp * 128 + (v + 1) * C1] = w1[kh, kw]
  # lhs chunks = padded rows [2u, 2u+1, 2u+2, 2u+3]; even act1 row 2u uses
  # chunks 0..2 (cols 0:256), odd row 2u+1 uses chunks 1..3 (cols 256:512).
  w1cat = np.zeros((K1, 2 * LANE1), np.float32)
  for t in range(3):
    w1cat[t * 18:(t + 1) * 18, 0:LANE1] = w1big[t]
    w1cat[(t + 1) * 18:(t + 2) * 18, LANE1:] = w1big[t]

  # conv2: per-kh banded matrix mapping one pooled1 row (128 lanes = v*16 + c)
  # to the 256-lane conv2 output row (lane = b2*128 + v2*32 + d); column zero
  # padding is realized by dropping out-of-range taps.
  w2big = np.zeros((3, LANEP1, LANE2), np.float32)
  for kh in range(3):
    for vv in range(W3):
      for bp in range(2):
        j2 = 2 * vv + bp
        for kw in range(3):
          vin = j2 + kw - 1
          if 0 <= vin < W2:
            w2big[kh, vin * C1:(vin + 1) * C1,
                  bp * 128 + vv * C2: bp * 128 + (vv + 1) * C2] = w2[kh, kw]
  w2cat = np.concatenate([w2big[0], w2big[1], w2big[2]], axis=0)   # (384, 256)

  # Linear over the width axis: block-diagonal expansion so it runs as one GEMM
  # on the (v2*32 + d) pooled2 lanes; output lane = o*32 + d.
  w3big = np.zeros((LANEP2, LANEO), np.float32)
  eye = np.eye(C2, dtype=np.float32)
  for o in range(OUT_CLASSES):
    for vv in range(W3):
      w3big[vv * C2:(vv + 1) * C2, o * C2:(o + 1) * C2] = w3[o, vv] * eye

  aux = np.zeros((5, 2 * LANE1), np.float32)
  aux[0, :] = np.tile(s1, 2 * LANE1 // C1)
  aux[1, :] = np.tile(sb1, 2 * LANE1 // C1)
  aux[2, :LANE2] = np.tile(s2, LANE2 // C2)
  aux[3, :LANE2] = np.tile(sb2, LANE2 // C2)
  aux[4, :LANEO] = np.repeat(b3, C2)
  return tuple(jnp.asarray(t) for t in (w1cat, w2cat, w3big, aux))


def reference_forward(x, raw):
  """Pure-JAX (XLA) reference of the same forward pass, for verification."""
  (w1, b1, g1, be1, m1, v1, w2, b2, g2, be2, m2, v2, w3, b3) = raw
  hi = jax.lax.Precision.HIGHEST

  def block(inp, w_hwio, bc, g, be, m, v):
    y = jax.lax.conv_general_dilated(
        inp, w_hwio, window_strides=(1, 1), padding=[(1, 1), (1, 1)],
        dimension_numbers=("NCHW", "HWIO", "NCHW"), precision=hi)
    y = y + bc[None, :, None, None]
    scale = g / jnp.sqrt(v + BN_EPS)
    y = (y - m[None, :, None, None]) * scale[None, :, None, None] \
        + be[None, :, None, None]
    y = jnp.maximum(y, 0.0)
    return jax.lax.reduce_window(y, -jnp.inf, jax.lax.max,
                                 (1, 1, 2, 2), (1, 1, 2, 2), "VALID")

  h = block(x, w1, b1, g1, be1, m1, v1)
  h = block(h, w2, b2, g2, be2, m2, v2)
  return jnp.einsum("nchw,ow->ncho", h, w3, precision=hi) + b3[None, None, None, :]


if __name__ == "__main__":
  key = jax.random.PRNGKey(0)
  kx, kp = jax.random.split(key)
  x = jax.random.normal(kx, (2, 1, H, W), jnp.float32)

  raw = init_raw_params(kp)
  packed = pack_params(raw)

  out = jax.block_until_ready(action_cnn_forward(x, packed))
  assert out.shape == (2, C2, H3, OUT_CLASSES), out.shape

  ref = reference_forward(x, raw)
  err = float(jnp.max(jnp.abs(out - ref)))
  # all-f32 path: observed error is reduction-order level (~1e-5); 2e-3 is margin.
  assert err < 2e-3, f"max abs error vs reference: {err}"
  print("KERNEL_OK")
</pallas_src>

<mosaic_0001>
module attributes {stable_mosaic.version = 11 : i64} {
  func.func @_action_cnn_kernel(%arg0: i32, %arg1: memref<16x72xf32, #tpu.memory_space<vmem>>, %arg2: memref<72x512xf32, #tpu.memory_space<vmem>>, %arg3: memref<384x256xf32, #tpu.memory_space<vmem>>, %arg4: memref<128x160xf32, #tpu.memory_space<vmem>>, %arg5: memref<5x512xf32, #tpu.memory_space<vmem>>, %arg6: memref<8x160xf32, #tpu.memory_space<vmem>>) attributes {dimension_semantics = [#tpu.dimension_semantics<parallel>], iteration_bounds = array<i64: 1>, scalar_prefetch = 0 : i64, scratch_operands = 0 : i64, tpu.core_type = #tpu.core_type<tc>, window_params = [{transform_indices = @transform_0, window_bounds = array<i64: 16, 72>}, {pipeline_mode = #tpu.pipeline_mode<synchronous>, transform_indices = @transform_1, window_bounds = array<i64: 72, 512>}, {pipeline_mode = #tpu.pipeline_mode<synchronous>, transform_indices = @transform_2, window_bounds = array<i64: 384, 256>}, {pipeline_mode = #tpu.pipeline_mode<synchronous>, transform_indices = @transform_3, window_bounds = array<i64: 128, 160>}, {pipeline_mode = #tpu.pipeline_mode<synchronous>, transform_indices = @transform_4, window_bounds = array<i64: 5, 512>}, {transform_indices = @transform_5, window_bounds = array<i64: 8, 160>}]} {
    %c0 = arith.constant 0 : index
    %c0_0 = arith.constant 0 : index
    %0 = vector.load %arg5[%c0, %c0_0] : memref<5x512xf32, #tpu.memory_space<vmem>>, vector<1x512xf32>
    %c1 = arith.constant 1 : index
    %c0_1 = arith.constant 0 : index
    %1 = vector.load %arg5[%c1, %c0_1] : memref<5x512xf32, #tpu.memory_space<vmem>>, vector<1x512xf32>
    %c2 = arith.constant 2 : index
    %c0_2 = arith.constant 0 : index
    %2 = vector.load %arg5[%c2, %c0_2] : memref<5x512xf32, #tpu.memory_space<vmem>>, vector<1x256xf32>
    %c3 = arith.constant 3 : index
    %c0_3 = arith.constant 0 : index
    %3 = vector.load %arg5[%c3, %c0_3] : memref<5x512xf32, #tpu.memory_space<vmem>>, vector<1x256xf32>
    %c4 = arith.constant 4 : index
    %c0_4 = arith.constant 0 : index
    %4 = vector.load %arg5[%c4, %c0_4] : memref<5x512xf32, #tpu.memory_space<vmem>>, vector<1x160xf32>
    %c0_5 = arith.constant 0 : index
    %c0_6 = arith.constant 0 : index
    %5 = vector.load %arg1[%c0_5, %c0_6] : memref<16x72xf32, #tpu.memory_space<vmem>>, vector<16x72xf32>
    %c0_7 = arith.constant 0 : index
    %c0_8 = arith.constant 0 : index
    %6 = vector.load %arg2[%c0_7, %c0_8] : memref<72x512xf32, #tpu.memory_space<vmem>>, vector<72x512xf32>
    %cst = arith.constant dense<0.000000e+00> : vector<16x512xf32>
    %7 = tpu.matmul %5, %6, %cst {dimension_numbers = #tpu.dot_dimension_numbers<[1], [0], [0], [1], [0, 0, 1, 1], [], []>} : vector<16x72xf32>, vector<72x512xf32>, vector<16x512xf32> -> vector<16x512xf32>
    %8 = vector.broadcast %0 : vector<1x512xf32> to vector<16x512xf32>
    %9 = arith.mulf %7, %8 : vector<16x512xf32>
    %10 = vector.broadcast %1 : vector<1x512xf32> to vector<16x512xf32>
    %11 = arith.addf %9, %10 : vector<16x512xf32>
    %cst_9 = arith.constant 0.000000e+00 : f32
    %12 = vector.broadcast %cst_9 : f32 to vector<16x512xf32>
    %13 = arith.maximumf %11, %12 : vector<16x512xf32>
    %14 = vector.extract_strided_slice %13 {offsets = [0, 0], sizes = [16, 256], strides = [1, 1]} : vector<16x512xf32> to vector<16x256xf32>
    %15 = vector.extract_strided_slice %13 {offsets = [0, 256], sizes = [16, 256], strides = [1, 1]} : vector<16x512xf32> to vector<16x256xf32>
    %16 = vector.extract_strided_slice %14 {offsets = [0, 0], sizes = [16, 128], strides = [1, 1]} : vector<16x256xf32> to vector<16x128xf32>
    %17 = vector.extract_strided_slice %14 {offsets = [0, 128], sizes = [16, 128], strides = [1, 1]} : vector<16x256xf32> to vector<16x128xf32>
    %18 = arith.maximumf %16, %17 : vector<16x128xf32>
    %19 = vector.extract_strided_slice %15 {offsets = [0, 0], sizes = [16, 128], strides = [1, 1]} : vector<16x256xf32> to vector<16x128xf32>
    %20 = vector.extract_strided_slice %15 {offsets = [0, 128], sizes = [16, 128], strides = [1, 1]} : vector<16x256xf32> to vector<16x128xf32>
    %21 = arith.maximumf %19, %20 : vector<16x128xf32>
    %22 = arith.maximumf %18, %21 : vector<16x128xf32>
    %23 = vector.shape_cast %22 : vector<16x128xf32> to vector<2x8x128xf32>
    %24 = vector.extract_strided_slice %23 {offsets = [0, 0, 0], sizes = [2, 4, 128], strides = [1, 1, 1]} : vector<2x8x128xf32> to vector<2x4x128xf32>
    %25 = vector.extract_strided_slice %23 {offsets = [0, 4, 0], sizes = [2, 4, 128], strides = [1, 1, 1]} : vector<2x8x128xf32> to vector<2x4x128xf32>
    %cst_10 = arith.constant 0.000000e+00 : f32
    %26 = vector.broadcast %cst_10 : f32 to vector<2x1x128xf32>
    %27 = tpu.concatenate %24, %26 in 1 : vector<2x4x128xf32>, vector<2x1x128xf32> -> vector<2x5x128xf32>
    %28 = tpu.concatenate %26, %25 in 1 : vector<2x1x128xf32>, vector<2x4x128xf32> -> vector<2x5x128xf32>
    %29 = vector.extract_strided_slice %28 {offsets = [0, 0, 0], sizes = [2, 4, 128], strides = [1, 1, 1]} : vector<2x5x128xf32> to vector<2x4x128xf32>
    %30 = vector.extract_strided_slice %28 {offsets = [0, 1, 0], sizes = [2, 4, 128], strides = [1, 1, 1]} : vector<2x5x128xf32> to vector<2x4x128xf32>
    %31 = tpu.concatenate %29, %24, %30 in 2 : vector<2x4x128xf32>, vector<2x4x128xf32>, vector<2x4x128xf32> -> vector<2x4x384xf32>
    %32 = vector.extract_strided_slice %28 {offsets = [0, 1, 0], sizes = [2, 4, 128], strides = [1, 1, 1]} : vector<2x5x128xf32> to vector<2x4x128xf32>
    %33 = vector.extract_strided_slice %27 {offsets = [0, 1, 0], sizes = [2, 4, 128], strides = [1, 1, 1]} : vector<2x5x128xf32> to vector<2x4x128xf32>
    %34 = tpu.concatenate %24, %32, %33 in 2 : vector<2x4x128xf32>, vector<2x4x128xf32>, vector<2x4x128xf32> -> vector<2x4x384xf32>
    %35 = tpu.concatenate %31, %34 in 1 : vector<2x4x384xf32>, vector<2x4x384xf32> -> vector<2x8x384xf32>
    %36 = vector.shape_cast %35 : vector<2x8x384xf32> to vector<16x384xf32>
    %c0_11 = arith.constant 0 : index
    %c0_12 = arith.constant 0 : index
    %37 = vector.load %arg3[%c0_11, %c0_12] : memref<384x256xf32, #tpu.memory_space<vmem>>, vector<384x256xf32>
    %cst_13 = arith.constant dense<0.000000e+00> : vector<16x256xf32>
    %38 = tpu.matmul %36, %37, %cst_13 {dimension_numbers = #tpu.dot_dimension_numbers<[1], [0], [0], [1], [0, 0, 1, 1], [], []>} : vector<16x384xf32>, vector<384x256xf32>, vector<16x256xf32> -> vector<16x256xf32>
    %39 = vector.broadcast %2 : vector<1x256xf32> to vector<16x256xf32>
    %40 = arith.mulf %38, %39 : vector<16x256xf32>
    %41 = vector.broadcast %3 : vector<1x256xf32> to vector<16x256xf32>
    %42 = arith.addf %40, %41 : vector<16x256xf32>
    %cst_14 = arith.constant 0.000000e+00 : f32
    %43 = vector.broadcast %cst_14 : f32 to vector<16x256xf32>
    %44 = arith.maximumf %42, %43 : vector<16x256xf32>
    %45 = vector.shape_cast %44 : vector<16x256xf32> to vector<2x8x256xf32>
    %46 = vector.extract_strided_slice %45 {offsets = [0, 0, 0], sizes = [2, 4, 256], strides = [1, 1, 1]} : vector<2x8x256xf32> to vector<2x4x256xf32>
    %47 = vector.extract_strided_slice %45 {offsets = [0, 4, 0], sizes = [2, 4, 256], strides = [1, 1, 1]} : vector<2x8x256xf32> to vector<2x4x256xf32>
    %48 = vector.extract_strided_slice %46 {offsets = [0, 0, 0], sizes = [2, 4, 128], strides = [1, 1, 1]} : vector<2x4x256xf32> to vector<2x4x128xf32>
    %49 = vector.extract_strided_slice %46 {offsets = [0, 0, 128], sizes = [2, 4, 128], strides = [1, 1, 1]} : vector<2x4x256xf32> to vector<2x4x128xf32>
    %50 = arith.maximumf %48, %49 : vector<2x4x128xf32>
    %51 = vector.extract_strided_slice %47 {offsets = [0, 0, 0], sizes = [2, 4, 128], strides = [1, 1, 1]} : vector<2x4x256xf32> to vector<2x4x128xf32>
    %52 = vector.extract_strided_slice %47 {offsets = [0, 0, 128], sizes = [2, 4, 128], strides = [1, 1, 1]} : vector<2x4x256xf32> to vector<2x4x128xf32>
    %53 = arith.maximumf %51, %52 : vector<2x4x128xf32>
    %54 = arith.maximumf %50, %53 : vector<2x4x128xf32>
    %55 = vector.shape_cast %54 : vector<2x4x128xf32> to vector<8x128xf32>
    %c0_15 = arith.constant 0 : index
    %c0_16 = arith.constant 0 : index
    %56 = vector.load %arg4[%c0_15, %c0_16] : memref<128x160xf32, #tpu.memory_space<vmem>>, vector<128x160xf32>
    %cst_17 = arith.constant dense<0.000000e+00> : vector<8x160xf32>
    %57 = tpu.matmul %55, %56, %cst_17 {dimension_numbers = #tpu.dot_dimension_numbers<[1], [0], [0], [1], [0, 0, 1, 1], [], []>} : vector<8x128xf32>, vector<128x160xf32>, vector<8x160xf32> -> vector<8x160xf32>
    %58 = vector.broadcast %4 : vector<1x160xf32> to vector<8x160xf32>
    %59 = arith.addf %57, %58 : vector<8x160xf32>
    %c0_18 = arith.constant 0 : index
    %c0_19 = arith.constant 0 : index
    %60 = vector.load %arg6[%c0_18, %c0_19] : memref<8x160xf32, #tpu.memory_space<vmem>>, vector<8x160xf32>
    tpu.vector_store %arg6[%c0_18, %c0_19], %59 {strides = array<i32>} : memref<8x160xf32, #tpu.memory_space<vmem>>, vector<8x160xf32>,
    return
  }
  func.func @transform_0(%arg0: i32) -> (i32, i32) {
    %c0_i32 = arith.constant 0 : i32
    %c0_i32_0 = arith.constant 0 : i32
    return %arg0, %c0_i32 : i32, i32
  }
  func.func @transform_1(%arg0: i32) -> (i32, i32) {
    %c0_i32 = arith.constant 0 : i32
    %c0_i32_0 = arith.constant 0 : i32
    %c0_i32_1 = arith.constant 0 : i32
    return %c0_i32, %c0_i32_0 : i32, i32
  }
  func.func @transform_2(%arg0: i32) -> (i32, i32) {
    %c0_i32 = arith.constant 0 : i32
    %c0_i32_0 = arith.constant 0 : i32
    %c0_i32_1 = arith.constant 0 : i32
    return %c0_i32, %c0_i32_0 : i32, i32
  }
  func.func @transform_3(%arg0: i32) -> (i32, i32) {
    %c0_i32 = arith.constant 0 : i32
    %c0_i32_0 = arith.constant 0 : i32
    %c0_i32_1 = arith.constant 0 : i32
    return %c0_i32, %c0_i32_0 : i32, i32
  }
  func.func @transform_4(%arg0: i32) -> (i32, i32) {
    %c0_i32 = arith.constant 0 : i32
    %c0_i32_0 = arith.constant 0 : i32
    %c0_i32_1 = arith.constant 0 : i32
    return %c0_i32, %c0_i32_0 : i32, i32
  }
  func.func @transform_5(%arg0: i32) -> (i32, i32) {
    %c0_i32 = arith.constant 0 : i32
    %c0_i32_0 = arith.constant 0 : i32
    return %arg0, %c0_i32 : i32, i32
  }
}

</mosaic_0001>

<llo_original>
// kernel: action_cnn_forward.1
$region0: #{action_cnn_forward.1}
  #allocation0 [shape = 'u32[]', space=smem, size = 0x4, offset = 0x4, fixed_abs, tag = 'smem constant byte address 0x4 - core index']
  #allocation1 [shape = 'u32[72,128]{1,0:T(1,128)}', space=vmem, size = 0x9000, scoped, tag = 'internal scratch']
  %s0 = inlined_call_operand.vmem [shape: f32[16,72], index: 0, kind: input, shape index: {}]
  %s1 = inlined_call_operand.vmem [shape: f32[72,512], index: 1, kind: input, shape index: {}]
  %s2 = inlined_call_operand.hbm [shape: f32[384,256], index: 2, kind: input, shape index: {}]
  %s3 = inlined_call_operand.vmem [shape: f32[128,160], index: 3, kind: input, shape index: {}]
  %s4 = inlined_call_operand.vmem [shape: f32[5,512], index: 4, kind: input, shape index: {}]
  %s5 = inlined_call_operand.vmem [shape: f32[8,160], index: 5, kind: output, shape index: {}]
  %s6 = sld [smem:[#allocation0]]
  $region34: #{action_cnn_forward.1} parent=0
    _
  %s8 = ssub.s32 1, %s6
  %s9 = scalar_select 0, %s8, %s6
  $region1: #{action_cnn_forward.1} parent=0
    #allocation2 [shape = 'u8[393216]{0}', space=vmem, size = 0x60000, scoped, tag = 'input window, operand 2, single buffered']
    #allocation3 [shape = 's32[1]{0}', space=sflag, size = 0x4, scoped, tag = 'scoped memory for action_cnn_forward.1']
    %10 = vsyncpa [#allocation3], 0
    // Predicated region
    $region2: #{action_cnn_forward.1} parent=1 // pred_check
      _
    $region3: #{action_cnn_forward.1} parent=1 // pred_check_branch
      %12 = sbr.rel (0) target = $region5
    $region4: #{action_cnn_forward.1} parent=1 // pred_region
      _
    $region5: #{action_cnn_forward.1} parent=1 // pred_fallthru
      _
    // Predicated region
    $region6: #{action_cnn_forward.1} parent=1 // pred_check
      _
    $region7: #{action_cnn_forward.1} parent=1 // pred_check_branch
      %14 = sbr.rel (0) target = $region9
    $region8: #{action_cnn_forward.1} parent=1 // pred_region
      _
    $region9: #{action_cnn_forward.1} parent=1 // pred_fallthru
      _
    // Predicated region
    $region10: #{action_cnn_forward.1} parent=1 // pred_check
      _
    $region11: #{action_cnn_forward.1} parent=1 // pred_check_branch
      %16 = sbr.rel (0) target = $region13
    $region12: #{action_cnn_forward.1} parent=1 // pred_region
      %18 = vsyncadd [#allocation3], 0
      %s19 = sshll.u32 %s2, 4
      %s20 = int_to_ptr.hbm [resolvable:$true] %s19
      %s21 = sshll.u32 [#allocation2], 4
      %s22 = int_to_ptr.vmem [resolvable:$true] %s21
      %27 = dma.hbm_to_vmem [thread:$0]  %s20, 12288, %s22, [#allocation3], 256, 256, 16
    $region13: #{action_cnn_forward.1} parent=1 // pred_fallthru
      _
    // Predicated region
    $region14: #{action_cnn_forward.1} parent=1 // pred_check
      _
    $region15: #{action_cnn_forward.1} parent=1 // pred_check_branch
      %29 = sbr.rel (0) target = $region17
    $region16: #{action_cnn_forward.1} parent=1 // pred_region
      _
    $region17: #{action_cnn_forward.1} parent=1 // pred_fallthru
      _
    // Predicated region
    $region18: #{action_cnn_forward.1} parent=1 // pred_check
      _
    $region19: #{action_cnn_forward.1} parent=1 // pred_check_branch
      %31 = sbr.rel (0) target = $region21
    $region20: #{action_cnn_forward.1} parent=1 // pred_region
      _
    $region21: #{action_cnn_forward.1} parent=1 // pred_fallthru
      _
    // Predicated region
    $region22: #{action_cnn_forward.1} parent=1 // pred_check
      _
    $region23: #{action_cnn_forward.1} parent=1 // pred_check_branch
      %33 = sbr.rel (0) target = $region25
    $region24: #{action_cnn_forward.1} parent=1 // pred_region
      %35 = dma.done [#allocation3], 12288
    $region25: #{action_cnn_forward.1} parent=1 // pred_fallthru
      _
    %v36 = vld [vmem:[%s4] ss:$8 sm:$0xf]
    %s37 = scalar_lea.vmem %s4, 1
    %v38 = vld [vmem:[%s37] ss:$8 sm:$0xf]
    %s39 = scalar_lea.vmem %s4, 2
    %v40 = vld [vmem:[%s39] ss:$8 sm:$0x3]
    %s41 = scalar_lea.vmem %s4, 3
    %v42 = vld [vmem:[%s41] ss:$8 sm:$0x3]
    %s43 = scalar_lea.vmem %s4, 4
    %v44 = vld [vmem:[%s43] ss:$8 sm:$0x3]
    %v45 = vld [vmem:[%s0] sm:$0xff]
    %v46 = vld [vmem:[%s0 + $0x8] sm:$0xff]
    %v47 = vld [vmem:[%s1] sm:$0xff]
    %v48 = vld [vmem:[%s1 + $0x8] sm:$0xff]
    %v49 = vld [vmem:[%s1 + $0x10] sm:$0xff]
    %v50 = vld [vmem:[%s1 + $0x18] sm:$0xff]
    %v51 = vld [vmem:[%s1 + $0x20] sm:$0xff]
    %v52 = vld [vmem:[%s1 + $0x28] sm:$0xff]
    %v53 = vld [vmem:[%s1 + $0x30] sm:$0xff]
    %v54 = vld [vmem:[%s1 + $0x38] sm:$0xff]
    %v55 = vld [vmem:[%s1 + $0x40] sm:$0xff]
    %v56 = vld [vmem:[%s1 + $0x48] sm:$0xff]
    %v57 = vld [vmem:[%s1 + $0x50] sm:$0xff]
    %v58 = vld [vmem:[%s1 + $0x58] sm:$0xff]
    %v59 = vld [vmem:[%s1 + $0x60] sm:$0xff]
    %v60 = vld [vmem:[%s1 + $0x68] sm:$0xff]
    %v61 = vld [vmem:[%s1 + $0x70] sm:$0xff]
    %v62 = vld [vmem:[%s1 + $0x78] sm:$0xff]
    %v63 = vld [vmem:[%s1 + $0x80] sm:$0xff]
    %v64 = vld [vmem:[%s1 + $0x88] sm:$0xff]
    %v65 = vld [vmem:[%s1 + $0x90] sm:$0xff]
    %v66 = vld [vmem:[%s1 + $0x98] sm:$0xff]
    %v67 = vld [vmem:[%s1 + $0xa0] sm:$0xff]
    %v68 = vld [vmem:[%s1 + $0xa8] sm:$0xff]
    %v69 = vld [vmem:[%s1 + $0xb0] sm:$0xff]
    %v70 = vld [vmem:[%s1 + $0xb8] sm:$0xff]
    %v71 = vld [vmem:[%s1 + $0xc0] sm:$0xff]
    %v72 = vld [vmem:[%s1 + $0xc8] sm:$0xff]
    %v73 = vld [vmem:[%s1 + $0xd0] sm:$0xff]
    %v74 = vld [vmem:[%s1 + $0xd8] sm:$0xff]
    %v75 = vld [vmem:[%s1 + $0xe0] sm:$0xff]
    %v76 = vld [vmem:[%s1 + $0xe8] sm:$0xff]
    %v77 = vld [vmem:[%s1 + $0xf0] sm:$0xff]
    %v78 = vld [vmem:[%s1 + $0xf8] sm:$0xff]
    %v79 = vld [vmem:[%s1 + $0x100] sm:$0xff]
    %v80 = vld [vmem:[%s1 + $0x108] sm:$0xff]
    %v81 = vld [vmem:[%s1 + $0x110] sm:$0xff]
    %v82 = vld [vmem:[%s1 + $0x118] sm:$0xff]
    %vm83 = vcmask 588800
    %v85 = vsel %vm83, %v45, 0
    %v88 = vsel %vm83, %v46, 0
    %90 = vmatpush.msra.mxu0 0.0
    %91 = vmatpush.msra.mxu0 0.0
    %92 = vmatpush.msra.mxu0 0.0
    %93 = vmatpush.msra.mxu0 0.0
    %94 = vmatpush.msra.mxu0 0.0
    %95 = vmatpush.msra.mxu0 0.0
    %96 = vmatpush.msra.mxu0 0.0
    %97 = vmatpush.msra.mxu0 %v79
    %98 = vmatpush.msra.mxu0 %v75
    %99 = vmatpush.msra.mxu0 %v71
    %100 = vmatpush.msra.mxu0 %v67
    %101 = vmatpush.msra.mxu0 %v63
    %102 = vmatpush.msra.mxu0 %v59
    %103 = vmatpush.msra.mxu0 %v55
    %104 = vmatpush.msra.mxu0 %v51
    %105 = vmatpush.msra.mxu0 %v47
    %106 = vmatmul.f32.gmra.mxu0 %v85
    %v107 = vpop.f32.mrf.mxu0
    %v108 = vadd.f32 0.0, %v107
    %109 = vmatmul.f32.gmra.mxu0 %v88
    %v110 = vpop.f32.mrf.mxu0
    %v111 = vadd.f32 0.0, %v110
    %112 = vdwg.mxu0
    %113 = vmatpush.msra.mxu0 0.0
    %114 = vmatpush.msra.mxu0 0.0
    %115 = vmatpush.msra.mxu0 0.0
    %116 = vmatpush.msra.mxu0 0.0
    %117 = vmatpush.msra.mxu0 0.0
    %118 = vmatpush.msra.mxu0 0.0
    %119 = vmatpush.msra.mxu0 0.0
    %120 = vmatpush.msra.mxu0 %v80
    %121 = vmatpush.msra.mxu0 %v76
    %122 = vmatpush.msra.mxu0 %v72
    %123 = vmatpush.msra.mxu0 %v68
    %124 = vmatpush.msra.mxu0 %v64
    %125 = vmatpush.msra.mxu0 %v60
    %126 = vmatpush.msra.mxu0 %v56
    %127 = vmatpush.msra.mxu0 %v52
    %128 = vmatpush.msra.mxu0 %v48
    %129 = vmatmul.f32.gmra.mxu0 %v85
    %v130 = vpop.f32.mrf.mxu0
    %v131 = vadd.f32 0.0, %v130
    %132 = vmatmul.f32.gmra.mxu0 %v88
    %v133 = vpop.f32.mrf.mxu0
    %v134 = vadd.f32 0.0, %v133
    %135 = vdwg.mxu0
    %136 = vmatpush.msra.mxu0 0.0
    %137 = vmatpush.msra.mxu0 0.0
    %138 = vmatpush.msra.mxu0 0.0
    %139 = vmatpush.msra.mxu0 0.0
    %140 = vmatpush.msra.mxu0 0.0
    %141 = vmatpush.msra.mxu0 0.0
    %142 = vmatpush.msra.mxu0 0.0
    %143 = vmatpush.msra.mxu0 %v81
    %144 = vmatpush.msra.mxu0 %v77
    %145 = vmatpush.msra.mxu0 %v73
    %146 = vmatpush.msra.mxu0 %v69
    %147 = vmatpush.msra.mxu0 %v65
    %148 = vmatpush.msra.mxu0 %v61
    %149 = vmatpush.msra.mxu0 %v57
    %150 = vmatpush.msra.mxu0 %v53
    %151 = vmatpush.msra.mxu0 %v49
    %152 = vmatmul.f32.gmra.mxu0 %v85
    %v153 = vpop.f32.mrf.mxu0
    %v154 = vadd.f32 0.0, %v153
    %155 = vmatmul.f32.gmra.mxu0 %v88
    %v156 = vpop.f32.mrf.mxu0
    %v157 = vadd.f32 0.0, %v156
    %158 = vdwg.mxu0
    %159 = vmatpush.msra.mxu0 0.0
    %160 = vmatpush.msra.mxu0 0.0
    %161 = vmatpush.msra.mxu0 0.0
    %162 = vmatpush.msra.mxu0 0.0
    %163 = vmatpush.msra.mxu0 0.0
    %164 = vmatpush.msra.mxu0 0.0
    %165 = vmatpush.msra.mxu0 0.0
    %166 = vmatpush.msra.mxu0 %v82
    %167 = vmatpush.msra.mxu0 %v78
    %168 = vmatpush.msra.mxu0 %v74
    %169 = vmatpush.msra.mxu0 %v70
    %170 = vmatpush.msra.mxu0 %v66
    %171 = vmatpush.msra.mxu0 %v62
    %172 = vmatpush.msra.mxu0 %v58
    %173 = vmatpush.msra.mxu0 %v54
    %174 = vmatpush.msra.mxu0 %v50
    %175 = vmatmul.f32.gmra.mxu0 %v85
    %v176 = vpop.f32.mrf.mxu0
    %v177 = vadd.f32 0.0, %v176
    %178 = vmatmul.f32.gmra.mxu0 %v88
    %v179 = vpop.f32.mrf.mxu0
    %v180 = vadd.f32 0.0, %v179
    %181 = vdwg.mxu0
    %v183 = vperm.slane %v36, 0
    %v184 = vperm.slane %v36, 1
    %v185 = vperm.slane %v36, 2
    %v186 = vperm.slane %v36, 3
    %v191 = vmul.f32 %v108, %v183
    %v192 = vmul.f32 %v131, %v184
    %v193 = vmul.f32 %v154, %v185
    %v194 = vmul.f32 %v177, %v186
    %v195 = vmul.f32 %v111, %v183
    %v196 = vmul.f32 %v134, %v184
    %v197 = vmul.f32 %v157, %v185
    %v198 = vmul.f32 %v180, %v186
    %v200 = vperm.slane %v38, 0
    %v201 = vperm.slane %v38, 1
    %v202 = vperm.slane %v38, 2
    %v203 = vperm.slane %v38, 3
    %v208 = vadd.f32 %v191, %v200
    %v209 = vadd.f32 %v192, %v201
    %v210 = vadd.f32 %v193, %v202
    %v211 = vadd.f32 %v194, %v203
    %v212 = vadd.f32 %v195, %v200
    %v213 = vadd.f32 %v196, %v201
    %v214 = vadd.f32 %v197, %v202
    %v215 = vadd.f32 %v198, %v203
    %v216 = vmax.f32 %v208, 0.0
    %v217 = vmax.f32 %v209, 0.0
    %v218 = vmax.f32 %v210, 0.0
    %v219 = vmax.f32 %v211, 0.0
    %v220 = vmax.f32 %v212, 0.0
    %v221 = vmax.f32 %v213, 0.0
    %v222 = vmax.f32 %v214, 0.0
    %v223 = vmax.f32 %v215, 0.0
    %v224 = vmax.f32 %v216, %v217
    %v225 = vmax.f32 %v220, %v221
    %v226 = vmax.f32 %v218, %v219
    %v227 = vmax.f32 %v222, %v223
    %v228 = vmax.f32 %v224, %v226
    %v229 = vmax.f32 %v225, %v227
    %vm230 = vcmask 1043456
    %v231 = vsel %vm230, %v228, 0.0
    %v232 = vsel %vm230, %v229, 0.0
    %v235 = vrot.slane %v228, 3
    %v236 = vrot.slane %v229, 3
    %vm239 = vcmask 1040384
    %v240 = vsel %vm239, 0.0, %v235
    %v241 = vsel %vm239, 0.0, %v236
    %v244 = vrot.slane %v240, 1
    %v245 = vrot.slane %v241, 1
    %v250 = vrot.slane %v231, 1
    %v251 = vrot.slane %v232, 1
    %v252 = vrot.slane %v228, 4
    %v253 = vrot.slane %v244, 4
    %v254 = vrot.slane %v250, 4
    %v255 = vrot.slane %v229, 4
    %v256 = vrot.slane %v245, 4
    %v257 = vrot.slane %v251, 4
    %v264 = vsel %vm230, %v240, %v252
    %v265 = vsel %vm230, %v228, %v253
    %v266 = vsel %vm230, %v244, %v254
    %v267 = vsel %vm230, %v241, %v255
    %v268 = vsel %vm230, %v229, %v256
    %v269 = vsel %vm230, %v245, %v257
    %v270 = vld [vmem:[#allocation2] sm:$0xff]
    %v271 = vld [vmem:[#allocation2 + $0x8] sm:$0xff]
    %v272 = vld [vmem:[#allocation2 + $0x10] sm:$0xff]
    %v273 = vld [vmem:[#allocation2 + $0x18] sm:$0xff]
    %v274 = vld [vmem:[#allocation2 + $0x20] sm:$0xff]
    %v275 = vld [vmem:[#allocation2 + $0x28] sm:$0xff]
    %v276 = vld [vmem:[#allocation2 + $0x30] sm:$0xff]
    %v277 = vld [vmem:[#allocation2 + $0x38] sm:$0xff]
    %v278 = vld [vmem:[#allocation2 + $0x40] sm:$0xff]
    %v279 = vld [vmem:[#allocation2 + $0x48] sm:$0xff]
    %v280 = vld [vmem:[#allocation2 + $0x50] sm:$0xff]
    %v281 = vld [vmem:[#allocation2 + $0x58] sm:$0xff]
    %v282 = vld [vmem:[#allocation2 + $0x60] sm:$0xff]
    %v283 = vld [vmem:[#allocation2 + $0x68] sm:$0xff]
    %v284 = vld [vmem:[#allocation2 + $0x70] sm:$0xff]
    %v285 = vld [vmem:[#allocation2 + $0x78] sm:$0xff]
    %v286 = vld [vmem:[#allocation2 + $0x80] sm:$0xff]
    %v287 = vld [vmem:[#allocation2 + $0x88] sm:$0xff]
    %v288 = vld [vmem:[#allocation2 + $0x90] sm:$0xff]
    %v289 = vld [vmem:[#allocation2 + $0x98] sm:$0xff]
    %v290 = vld [vmem:[#allocation2 + $0xa0] sm:$0xff]
    %v291 = vld [vmem:[#allocation2 + $0xa8] sm:$0xff]
    %v292 = vld [vmem:[#allocation2 + $0xb0] sm:$0xff]
    %v293 = vld [vmem:[#allocation2 + $0xb8] sm:$0xff]
    %v294 = vld [vmem:[#allocation2 + $0xc0] sm:$0xff]
    %v295 = vld [vmem:[#allocation2 + $0xc8] sm:$0xff]
    %v296 = vld [vmem:[#allocation2 + $0xd0] sm:$0xff]
    %v297 = vld [vmem:[#allocation2 + $0xd8] sm:$0xff]
    %v298 = vld [vmem:[#allocation2 + $0xe0] sm:$0xff]
    %v299 = vld [vmem:[#allocation2 + $0xe8] sm:$0xff]
    %v300 = vld [vmem:[#allocation2 + $0xf0] sm:$0xff]
    %v301 = vld [vmem:[#allocation2 + $0xf8] sm:$0xff]
    %v302 = vld [vmem:[#allocation2 + $0x100] sm:$0xff]
    %v303 = vld [vmem:[#allocation2 + $0x108] sm:$0xff]
    %v304 = vld [vmem:[#allocation2 + $0x110] sm:$0xff]
    %v305 = vld [vmem:[#allocation2 + $0x118] sm:$0xff]
    %v306 = vld [vmem:[#allocation2 + $0x120] sm:$0xff]
    %v307 = vld [vmem:[#allocation2 + $0x128] sm:$0xff]
    %v308 = vld [vmem:[#allocation2 + $0x130] sm:$0xff]
    %v309 = vld [vmem:[#allocation2 + $0x138] sm:$0xff]
    %v310 = vld [vmem:[#allocation2 + $0x140] sm:$0xff]
    %v311 = vld [vmem:[#allocation2 + $0x148] sm:$0xff]
    %v312 = vld [vmem:[#allocation2 + $0x150] sm:$0xff]
    %v313 = vld [vmem:[#allocation2 + $0x158] sm:$0xff]
    %v314 = vld [vmem:[#allocation2 + $0x160] sm:$0xff]
    %v315 = vld [vmem:[#allocation2 + $0x168] sm:$0xff]
    %v316 = vld [vmem:[#allocation2 + $0x170] sm:$0xff]
    %v317 = vld [vmem:[#allocation2 + $0x178] sm:$0xff]
    %v318 = vld [vmem:[#allocation2 + $0x180] sm:$0xff]
    %v319 = vld [vmem:[#allocation2 + $0x188] sm:$0xff]
    %v320 = vld [vmem:[#allocation2 + $0x190] sm:$0xff]
    %v321 = vld [vmem:[#allocation2 + $0x198] sm:$0xff]
    %v322 = vld [vmem:[#allocation2 + $0x1a0] sm:$0xff]
    %v323 = vld [vmem:[#allocation2 + $0x1a8] sm:$0xff]
    %v324 = vld [vmem:[#allocation2 + $0x1b0] sm:$0xff]
    %v325 = vld [vmem:[#allocation2 + $0x1b8] sm:$0xff]
    %v326 = vld [vmem:[#allocation2 + $0x1c0] sm:$0xff]
    %v327 = vld [vmem:[#allocation2 + $0x1c8] sm:$0xff]
    %v328 = vld [vmem:[#allocation2 + $0x1d0] sm:$0xff]
    %v329 = vld [vmem:[#allocation2 + $0x1d8] sm:$0xff]
    %v330 = vld [vmem:[#allocation2 + $0x1e0] sm:$0xff]
    %v331 = vld [vmem:[#allocation2 + $0x1e8] sm:$0xff]
    %v332 = vld [vmem:[#allocation2 + $0x1f0] sm:$0xff]
    %v333 = vld [vmem:[#allocation2 + $0x1f8] sm:$0xff]
    %v334 = vld [vmem:[#allocation2 + $0x200] sm:$0xff]
    %v335 = vld [vmem:[#allocation2 + $0x208] sm:$0xff]
    %v336 = vld [vmem:[#allocation2 + $0x210] sm:$0xff]
    %v337 = vld [vmem:[#allocation2 + $0x218] sm:$0xff]
    %v338 = vld [vmem:[#allocation2 + $0x220] sm:$0xff]
    %v339 = vld [vmem:[#allocation2 + $0x228] sm:$0xff]
    %v340 = vld [vmem:[#allocation2 + $0x230] sm:$0xff]
    %v341 = vld [vmem:[#allocation2 + $0x238] sm:$0xff]
    %v342 = vld [vmem:[#allocation2 + $0x240] sm:$0xff]
    %v343 = vld [vmem:[#allocation2 + $0x248] sm:$0xff]
    %v344 = vld [vmem:[#allocation2 + $0x250] sm:$0xff]
    %v345 = vld [vmem:[#allocation2 + $0x258] sm:$0xff]
    %v346 = vld [vmem:[#allocation2 + $0x260] sm:$0xff]
    %v347 = vld [vmem:[#allocation2 + $0x268] sm:$0xff]
    %v348 = vld [vmem:[#allocation2 + $0x270] sm:$0xff]
    %v349 = vld [vmem:[#allocation2 + $0x278] sm:$0xff]
    %v350 = vld [vmem:[#allocation2 + $0x280] sm:$0xff]
    %v351 = vld [vmem:[#allocation2 + $0x288] sm:$0xff]
    %v352 = vld [vmem:[#allocation2 + $0x290] sm:$0xff]
    %v353 = vld [vmem:[#allocation2 + $0x298] sm:$0xff]
    %v354 = vld [vmem:[#allocation2 + $0x2a0] sm:$0xff]
    %v355 = vld [vmem:[#allocation2 + $0x2a8] sm:$0xff]
    %v356 = vld [vmem:[#allocation2 + $0x2b0] sm:$0xff]
    %v357 = vld [vmem:[#allocation2 + $0x2b8] sm:$0xff]
    %v358 = vld [vmem:[#allocation2 + $0x2c0] sm:$0xff]
    %v359 = vld [vmem:[#allocation2 + $0x2c8] sm:$0xff]
    %v360 = vld [vmem:[#allocation2 + $0x2d0] sm:$0xff]
    %v361 = vld [vmem:[#allocation2 + $0x2d8] sm:$0xff]
    %v362 = vld [vmem:[#allocation2 + $0x2e0] sm:$0xff]
    %v363 = vld [vmem:[#allocation2 + $0x2e8] sm:$0xff]
    %v364 = vld [vmem:[#allocation2 + $0x2f0] sm:$0xff]
    %v365 = vld [vmem:[#allocation2 + $0x2f8] sm:$0xff]
    %366 = vmatpush.msra.mxu0 %v300
    %367 = vmatpush.msra.mxu0 %v298
    %368 = vmatpush.msra.mxu0 %v296
    %369 = vmatpush.msra.mxu0 %v294
    %370 = vmatpush.msra.mxu0 %v292
    %371 = vmatpush.msra.mxu0 %v290
    %372 = vmatpush.msra.mxu0 %v288
    %373 = vmatpush.msra.mxu0 %v286
    %374 = vmatpush.msra.mxu0 %v284
    %375 = vmatpush.msra.mxu0 %v282
    %376 = vmatpush.msra.mxu0 %v280
    %377 = vmatpush.msra.mxu0 %v278
    %378 = vmatpush.msra.mxu0 %v276
    %379 = vmatpush.msra.mxu0 %v274
    %380 = vmatpush.msra.mxu0 %v272
    %381 = vmatpush.msra.mxu0 %v270
    %382 = vmatmul.f32.gmra.mxu0 %v264
    %v383 = vpop.f32.mrf.mxu0
    %v384 = vadd.f32 0.0, %v383
    %385 = vmatmul.f32.gmra.mxu0 %v267
    %v386 = vpop.f32.mrf.mxu0
    %v387 = vadd.f32 0.0, %v386
    %388 = vdwg.mxu0
    %389 = vmatpush.msra.mxu0 %v332
    %390 = vmatpush.msra.mxu0 %v330
    %391 = vmatpush.msra.mxu0 %v328
    %392 = vmatpush.msra.mxu0 %v326
    %393 = vmatpush.msra.mxu0 %v324
    %394 = vmatpush.msra.mxu0 %v322
    %395 = vmatpush.msra.mxu0 %v320
    %396 = vmatpush.msra.mxu0 %v318
    %397 = vmatpush.msra.mxu0 %v316
    %398 = vmatpush.msra.mxu0 %v314
    %399 = vmatpush.msra.mxu0 %v312
    %400 = vmatpush.msra.mxu0 %v310
    %401 = vmatpush.msra.mxu0 %v308
    %402 = vmatpush.msra.mxu0 %v306
    %403 = vmatpush.msra.mxu0 %v304
    %404 = vmatpush.msra.mxu0 %v302
    %405 = vmatmul.f32.gmra.mxu0 %v265
    %v406 = vpop.f32.mrf.mxu0
    %v407 = vadd.f32 %v384, %v406
    %408 = vmatmul.f32.gmra.mxu0 %v268
    %v409 = vpop.f32.mrf.mxu0
    %v410 = vadd.f32 %v387, %v409
    %411 = vdwg.mxu0
    %412 = vmatpush.msra.mxu0 %v364
    %413 = vmatpush.msra.mxu0 %v362
    %414 = vmatpush.msra.mxu0 %v360
    %415 = vmatpush.msra.mxu0 %v358
    %416 = vmatpush.msra.mxu0 %v356
    %417 = vmatpush.msra.mxu0 %v354
    %418 = vmatpush.msra.mxu0 %v352
    %419 = vmatpush.msra.mxu0 %v350
    %420 = vmatpush.msra.mxu0 %v348
    %421 = vmatpush.msra.mxu0 %v346
    %422 = vmatpush.msra.mxu0 %v344
    %423 = vmatpush.msra.mxu0 %v342
    %424 = vmatpush.msra.mxu0 %v340
    %425 = vmatpush.msra.mxu0 %v338
    %426 = vmatpush.msra.mxu0 %v336
    %427 = vmatpush.msra.mxu0 %v334
    %428 = vmatmul.f32.gmra.mxu0 %v266
    %v429 = vpop.f32.mrf.mxu0
    %v430 = vadd.f32 %v407, %v429
    %431 = vmatmul.f32.gmra.mxu0 %v269
    %v432 = vpop.f32.mrf.mxu0
    %v433 = vadd.f32 %v410, %v432
    %434 = vdwg.mxu0
    %435 = vmatpush.msra.mxu0 %v301
    %436 = vmatpush.msra.mxu0 %v299
    %437 = vmatpush.msra.mxu0 %v297
    %438 = vmatpush.msra.mxu0 %v295
    %439 = vmatpush.msra.mxu0 %v293
    %440 = vmatpush.msra.mxu0 %v291
    %441 = vmatpush.msra.mxu0 %v289
    %442 = vmatpush.msra.mxu0 %v287
    %443 = vmatpush.msra.mxu0 %v285
    %444 = vmatpush.msra.mxu0 %v283
    %445 = vmatpush.msra.mxu0 %v281
    %446 = vmatpush.msra.mxu0 %v279
    %447 = vmatpush.msra.mxu0 %v277
    %448 = vmatpush.msra.mxu0 %v275
    %449 = vmatpush.msra.mxu0 %v273
    %450 = vmatpush.msra.mxu0 %v271
    %451 = vmatmul.f32.gmra.mxu0 %v264
    %v452 = vpop.f32.mrf.mxu0
    %v453 = vadd.f32 0.0, %v452
    %454 = vmatmul.f32.gmra.mxu0 %v267
    %v455 = vpop.f32.mrf.mxu0
    %v456 = vadd.f32 0.0, %v455
    %457 = vdwg.mxu0
    %458 = vmatpush.msra.mxu0 %v333
    %459 = vmatpush.msra.mxu0 %v331
    %460 = vmatpush.msra.mxu0 %v329
    %461 = vmatpush.msra.mxu0 %v327
    %462 = vmatpush.msra.mxu0 %v325
    %463 = vmatpush.msra.mxu0 %v323
    %464 = vmatpush.msra.mxu0 %v321
    %465 = vmatpush.msra.mxu0 %v319
    %466 = vmatpush.msra.mxu0 %v317
    %467 = vmatpush.msra.mxu0 %v315
    %468 = vmatpush.msra.mxu0 %v313
    %469 = vmatpush.msra.mxu0 %v311
    %470 = vmatpush.msra.mxu0 %v309
    %471 = vmatpush.msra.mxu0 %v307
    %472 = vmatpush.msra.mxu0 %v305
    %473 = vmatpush.msra.mxu0 %v303
    %474 = vmatmul.f32.gmra.mxu0 %v265
    %v475 = vpop.f32.mrf.mxu0
    %v476 = vadd.f32 %v453, %v475
    %477 = vmatmul.f32.gmra.mxu0 %v268
    %v478 = vpop.f32.mrf.mxu0
    %v479 = vadd.f32 %v456, %v478
    %480 = vdwg.mxu0
    %481 = vmatpush.msra.mxu0 %v365
    %482 = vmatpush.msra.mxu0 %v363
    %483 = vmatpush.msra.mxu0 %v361
    %484 = vmatpush.msra.mxu0 %v359
    %485 = vmatpush.msra.mxu0 %v357
    %486 = vmatpush.msra.mxu0 %v355
    %487 = vmatpush.msra.mxu0 %v353
    %488 = vmatpush.msra.mxu0 %v351
    %489 = vmatpush.msra.mxu0 %v349
    %490 = vmatpush.msra.mxu0 %v347
    %491 = vmatpush.msra.mxu0 %v345
    %492 = vmatpush.msra.mxu0 %v343
    %493 = vmatpush.msra.mxu0 %v341
    %494 = vmatpush.msra.mxu0 %v339
    %495 = vmatpush.msra.mxu0 %v337
    %496 = vmatpush.msra.mxu0 %v335
    %497 = vmatmul.f32.gmra.mxu0 %v266
    %v498 = vpop.f32.mrf.mxu0
    %v499 = vadd.f32 %v476, %v498
    %500 = vmatmul.f32.gmra.mxu0 %v269
    %v501 = vpop.f32.mrf.mxu0
    %v502 = vadd.f32 %v479, %v501
    %503 = vdwg.mxu0
    %v505 = vperm.slane %v40, 0
    %v506 = vperm.slane %v40, 1
    %v509 = vmul.f32 %v430, %v505
    %v510 = vmul.f32 %v499, %v506
    %v511 = vmul.f32 %v433, %v505
    %v512 = vmul.f32 %v502, %v506
    %v514 = vperm.slane %v42, 0
    %v515 = vperm.slane %v42, 1
    %v518 = vadd.f32 %v509, %v514
    %v519 = vadd.f32 %v510, %v515
    %v520 = vadd.f32 %v511, %v514
    %v521 = vadd.f32 %v512, %v515
    %v522 = vmax.f32 %v518, 0.0
    %v523 = vmax.f32 %v519, 0.0
    %v524 = vmax.f32 %v520, 0.0
    %v525 = vmax.f32 %v521, 0.0
    %v526 = vmax.f32 %v522, %v523
    %v527 = vmax.f32 %v524, %v525
    %v530 = vrot.slane %v526, 4
    %v531 = vrot.slane %v527, 4
    %v534 = vmax.f32 %v526, %v530
    %v535 = vmax.f32 %v527, %v531
    %v536 = vld [vmem:[%s3] sm:$0xff]
    %v537 = vld [vmem:[%s3 + $0x8] sm:$0xff]
    %v538 = vld [vmem:[%s3 + $0x10] sm:$0xff]
    %v539 = vld [vmem:[%s3 + $0x18] sm:$0xff]
    %v540 = vld [vmem:[%s3 + $0x20] sm:$0xff]
    %v541 = vld [vmem:[%s3 + $0x28] sm:$0xff]
    %v542 = vld [vmem:[%s3 + $0x30] sm:$0xff]
    %v543 = vld [vmem:[%s3 + $0x38] sm:$0xff]
    %v544 = vld [vmem:[%s3 + $0x40] sm:$0xff]
    %v545 = vld [vmem:[%s3 + $0x48] sm:$0xff]
    %v546 = vld [vmem:[%s3 + $0x50] sm:$0xff]
    %v547 = vld [vmem:[%s3 + $0x58] sm:$0xff]
    %v548 = vld [vmem:[%s3 + $0x60] sm:$0xff]
    %v549 = vld [vmem:[%s3 + $0x68] sm:$0xff]
    %v550 = vld [vmem:[%s3 + $0x70] sm:$0xff]
    %v551 = vld [vmem:[%s3 + $0x78] sm:$0xff]
    %v552 = vld [vmem:[%s3 + $0x80] sm:$0xff]
    %v553 = vld [vmem:[%s3 + $0x88] sm:$0xff]
    %v554 = vld [vmem:[%s3 + $0x90] sm:$0xff]
    %v555 = vld [vmem:[%s3 + $0x98] sm:$0xff]
    %v556 = vld [vmem:[%s3 + $0xa0] sm:$0xff]
    %v557 = vld [vmem:[%s3 + $0xa8] sm:$0xff]
    %v558 = vld [vmem:[%s3 + $0xb0] sm:$0xff]
    %v559 = vld [vmem:[%s3 + $0xb8] sm:$0xff]
    %v560 = vld [vmem:[%s3 + $0xc0] sm:$0xff]
    %v561 = vld [vmem:[%s3 + $0xc8] sm:$0xff]
    %v562 = vld [vmem:[%s3 + $0xd0] sm:$0xff]
    %v563 = vld [vmem:[%s3 + $0xd8] sm:$0xff]
    %v564 = vld [vmem:[%s3 + $0xe0] sm:$0xff]
    %v565 = vld [vmem:[%s3 + $0xe8] sm:$0xff]
    %v566 = vld [vmem:[%s3 + $0xf0] sm:$0xff]
    %v567 = vld [vmem:[%s3 + $0xf8] sm:$0xff]
    %v569 = vperm.slane %v44, 0
    %v570 = vperm.slane %v44, 1
    %575 = vst [vmem:[#allocation1] ss:$2 sm:$0xff] %v534
    %s576 = scalar_lea.vmem [#allocation1], 1
    %577 = vst [vmem:[%s576] ss:$2 sm:$0xff] %v535
    %v578 = vld.sshfl [vmem:[#allocation1] sm:$0xff pattern:$0x75316420]
    %580 = vmatpush.msra.mxu0 %v566
    %581 = vmatpush.msra.mxu0 %v564
    %582 = vmatpush.msra.mxu0 %v562
    %583 = vmatpush.msra.mxu0 %v560
    %584 = vmatpush.msra.mxu0 %v558
    %585 = vmatpush.msra.mxu0 %v556
    %586 = vmatpush.msra.mxu0 %v554
    %587 = vmatpush.msra.mxu0 %v552
    %588 = vmatpush.msra.mxu0 %v550
    %589 = vmatpush.msra.mxu0 %v548
    %590 = vmatpush.msra.mxu0 %v546
    %591 = vmatpush.msra.mxu0 %v544
    %592 = vmatpush.msra.mxu0 %v542
    %593 = vmatpush.msra.mxu0 %v540
    %594 = vmatpush.msra.mxu0 %v538
    %595 = vmatpush.msra.mxu0 %v536
    %596 = vmatmul.f32.gmra.mxu0 %v578
    %v597 = vpop.f32.mrf.mxu0
    %v598 = vadd.f32 %v569, %v597
    %599 = vdwg.mxu0
    %600 = vmatpush.msra.mxu0 %v567
    %601 = vmatpush.msra.mxu0 %v565
    %602 = vmatpush.msra.mxu0 %v563
    %603 = vmatpush.msra.mxu0 %v561
    %604 = vmatpush.msra.mxu0 %v559
    %605 = vmatpush.msra.mxu0 %v557
    %606 = vmatpush.msra.mxu0 %v555
    %607 = vmatpush.msra.mxu0 %v553
    %608 = vmatpush.msra.mxu0 %v551
    %609 = vmatpush.msra.mxu0 %v549
    %610 = vmatpush.msra.mxu0 %v547
    %611 = vmatpush.msra.mxu0 %v545
    %612 = vmatpush.msra.mxu0 %v543
    %613 = vmatpush.msra.mxu0 %v541
    %614 = vmatpush.msra.mxu0 %v539
    %615 = vmatpush.msra.mxu0 %v537
    %616 = vmatmul.f32.gmra.mxu0 %v578
    %v617 = vpop.f32.mrf.mxu0
    %v618 = vadd.f32 %v570, %v617
    %619 = vdwg.mxu0
    %620 = vst [vmem:[%s5] sm:$0xff] %v598
    %vm621 = vcmask 261120
    %622 = vst.msk [vmem:[%s5 + $0x8] sm:$0xff] %vm621, %v618
    // Predicated region
    $region26: #{action_cnn_forward.1} parent=1 // pred_check
      _
    $region27: #{action_cnn_forward.1} parent=1 // pred_check_branch
      %624 = sbr.rel (0) target = $region29
    $region28: #{action_cnn_forward.1} parent=1 // pred_region
      _
    $region29: #{action_cnn_forward.1} parent=1 // pred_fallthru
      _
    // Predicated region
    $region30: #{action_cnn_forward.1} parent=1 // pred_check
      _
    $region31: #{action_cnn_forward.1} parent=1 // pred_check_branch
      %626 = sbr.rel (0) target = $region33
    $region32: #{action_cnn_forward.1} parent=1 // pred_region
      _
    $region33: #{action_cnn_forward.1} parent=1 // pred_fallthru
      _
    %627 = vsyncpa [#allocation3], 1

</llo_original>
